<compile_context>
chip_gen: v7x
topology: tpu7x:2x2x1
jax: 0.10.0
libtpu: 0.0.40
codegen_flags: <defaults>
</compile_context>

<pallas_src>
import functools

import jax
import jax.numpy as jnp
from jax.experimental import pallas as pl
from jax.experimental.pallas import tpu as pltpu


NEG_SLOPE = 0.01      # nn.LeakyReLU() default
LANE = 128            # TPU lane width
SUBLANE = 8           # TPU sublane width
H1, H2, H3, OUT = 100, 50, 25, 2


def _round_up(x, m):
    return (x + m - 1) // m * m


def _round_down(x, m):
    return (x // m) * m


def _leaky_relu(x):
    return jnp.where(x >= 0, x, NEG_SLOPE * x)


def mlp_kernel(x_ref, w1_ref, w_ref, b_ref, o_ref, *, compute_dtype):
    # x_ref already holds compute_dtype data (cast upstream -> the DMA moved bf16 on the
    # bf16 path).  Biases are f32; bias add + LeakyReLU run on the VPU in f32.
    x = x_ref[...]                                            # (tile_b, in_size)

    # Layer 1: (tile_b, in_size) @ (in_size, 128)
    h = jnp.dot(x, w1_ref[...], preferred_element_type=jnp.float32) + b_ref[0:1, :]
    h = _leaky_relu(h)
    # Layer 2: (tile_b, 128) @ (128, 128)
    h = jnp.dot(h.astype(compute_dtype), w_ref[0],
                preferred_element_type=jnp.float32) + b_ref[1:2, :]
    h = _leaky_relu(h)
    # Layer 3
    h = jnp.dot(h.astype(compute_dtype), w_ref[1],
                preferred_element_type=jnp.float32) + b_ref[2:3, :]
    h = _leaky_relu(h)
    # Layer 4 (no activation).  Matmul stays at native N=128 in VMEM; only the real
    # 2 logit columns are stored -> 64x less HBM writeback than a 128-wide output.
    out = jnp.dot(h.astype(compute_dtype), w_ref[2],
                  preferred_element_type=jnp.float32) + b_ref[3:4, :]
    o_ref[...] = out[:, :OUT].astype(o_ref.dtype)


def prepare_params(params, compute_dtype=jnp.float32):
    """Pad/cast weights ONCE (hoisted out of the forward): zero padding is exact."""
    (w1, b1), (w2, b2), (w3, b3), (w4, b4) = params
    in_size = w1.shape[0]

    def pad_w(w, k_pad, n_pad):
        out = jnp.zeros((k_pad, n_pad), compute_dtype)
        return out.at[:w.shape[0], :w.shape[1]].set(w.astype(compute_dtype))

    def pad_b(b):
        out = jnp.zeros((1, LANE), jnp.float32)
        return out.at[:, :b.shape[1]].set(b.astype(jnp.float32))

    w1p = pad_w(w1, in_size, LANE)                          # (in_size, 128) — K unpadded
    w234p = jnp.stack([pad_w(w2, LANE, LANE),
                       pad_w(w3, LANE, LANE),
                       pad_w(w4, LANE, LANE)])              # (3, 128, 128)
    bp = jnp.concatenate([pad_b(b1), pad_b(b2), pad_b(b3), pad_b(b4)], axis=0)  # (4, 128) f32
    return (w1p, w234p, bp)


def classification_mlp_forward(x, prepared, *, compute_dtype=jnp.float32,
                               tile_b_max=2048,
                               vmem_budget_bytes=24 * 1024 * 1024):
    """x: (B, input_size); prepared: output of prepare_params(params, compute_dtype)."""
    w1p, w234p, bp = prepared
    B, in_size = x.shape
    cdt = jnp.dtype(compute_dtype)
    assert w1p.shape == (in_size, LANE) and w1p.dtype == cdt, "prepared params mismatch"

    # ---- tile selection: honest VMEM accounting (double-buffered streams + resident,
    #      double-buffered weight tiles), safe under the 32 MiB scoped default everywhere.
    def tile_bytes(rows, cols, itemsize):
        sub = SUBLANE * (4 // itemsize)                     # f32: 8 rows/vreg, bf16: 16
        return _round_up(rows, sub) * _round_up(cols, LANE) * itemsize

    weights_vmem = 2 * (tile_bytes(in_size, LANE, cdt.itemsize)
                        + 3 * tile_bytes(LANE, LANE, cdt.itemsize)
                        + tile_bytes(4, LANE, 4))

    per_row = (2 * _round_up(in_size, LANE) * cdt.itemsize  # x tile, double-buffered
               + 2 * LANE * 4                               # out tile (lane-padded in VMEM), x2
               + 4 * LANE * 4)                              # in-flight f32 intermediates

    B8 = _round_up(B, SUBLANE)
    tile_b = min(tile_b_max, B8)
    # v7x: keep >=2 batch tiles so ("parallel",) can shard across the 2 TensorCores.
    if B8 >= 2 * SUBLANE:
        tile_b = min(tile_b, max(SUBLANE, _round_down(B8 // 2, SUBLANE)))
    avail = max(vmem_budget_bytes - weights_vmem, SUBLANE * per_row)
    tile_b = min(tile_b, max(SUBLANE, _round_down(avail // per_row, SUBLANE)))
    tile_b = max(SUBLANE, _round_down(tile_b, SUBLANE))

    B_pad = _round_up(B, tile_b)
    grid = (B_pad // tile_b,)

    # ---- input staging: cast so the DMA streams compute_dtype (bf16 path halves input
    #      HBM bytes); pad batch rows only when required; NO feature-dim padding of x.
    if B_pad != B:
        x_in = jnp.pad(x.astype(compute_dtype), ((0, B_pad - B), (0, 0)))
    elif x.dtype != cdt:
        x_in = x.astype(compute_dtype)
    else:
        x_in = x

    const2 = lambda i: (0, 0)
    const3 = lambda i: (0, 0, 0)

    flops = 2 * B_pad * (in_size * LANE + 3 * LANE * LANE)
    bytes_accessed = (x_in.size * cdt.itemsize + B_pad * OUT * 4
                      + w1p.size * cdt.itemsize + w234p.size * cdt.itemsize
                      + bp.size * 4)

    kernel = functools.partial(mlp_kernel, compute_dtype=compute_dtype)
    out = pl.pallas_call(
        kernel,
        out_shape=jax.ShapeDtypeStruct((B_pad, OUT), jnp.float32),
        grid=grid,
        in_specs=[
            pl.BlockSpec((tile_b, in_size), lambda i: (i, 0)),  # x: batch-tiled stream
            pl.BlockSpec((in_size, LANE), const2),              # W1 (resident)
            pl.BlockSpec((3, LANE, LANE), const3),              # W2/W3/W4 stacked (resident)
            pl.BlockSpec((4, LANE), const2),                    # b1..b4 stacked, f32 (resident)
        ],
        out_specs=pl.BlockSpec((tile_b, OUT), lambda i: (i, 0)),  # narrow lane-masked store
        compiler_params=pltpu.CompilerParams(
            dimension_semantics=("parallel",),                  # shard batch tiles across v7x TCs
        ),
        cost_estimate=pl.CostEstimate(flops=flops, transcendentals=0,
                                      bytes_accessed=bytes_accessed),
    )(x_in, w1p, w234p, bp)

    return out[:B]


def init_params(key, input_size):
    """Deterministic init mimicking nn.Linear default: U(-1/sqrt(fan_in), 1/sqrt(fan_in))."""
    sizes = [(input_size, H1), (H1, H2), (H2, H3), (H3, OUT)]
    params = []
    for (fan_in, fan_out) in sizes:
        key, kw, kb = jax.random.split(key, 3)
        bound = 1.0 / jnp.sqrt(jnp.float32(fan_in))
        w = jax.random.uniform(kw, (fan_in, fan_out), jnp.float32, -bound, bound)
        b = jax.random.uniform(kb, (1, fan_out), jnp.float32, -bound, bound)
        params.append((w, b))
    return params


def reference_forward(x, params):
    h = x
    for i, (w, b) in enumerate(params):
        h = h @ w + b
        if i < len(params) - 1:
            h = jnp.where(h >= 0, h, NEG_SLOPE * h)
    return h


if __name__ == "__main__":
    key = jax.random.PRNGKey(0)
    key, kx = jax.random.split(key)

    batch, input_size = 8, 32
    x = jax.random.normal(kx, (batch, input_size), jnp.float32)
    params = init_params(key, input_size)

    ref = reference_forward(x, params)

    # f32 path: exact (zero padding is value-preserving).
    prep_f32 = prepare_params(params, jnp.float32)
    out_f32 = jax.block_until_ready(
        classification_mlp_forward(x, prep_f32, compute_dtype=jnp.float32))
    assert out_f32.shape == (batch, OUT), out_f32.shape
    assert jnp.allclose(out_f32, ref, atol=1e-5, rtol=1e-5), \
        float(jnp.max(jnp.abs(out_f32 - ref)))

    # bf16 path: x and weights are streamed as bf16 (f32 accumulation + f32 epilogue).
    prep_bf16 = prepare_params(params, jnp.bfloat16)
    out_bf16 = jax.block_until_ready(
        classification_mlp_forward(x, prep_bf16, compute_dtype=jnp.bfloat16))
    assert out_bf16.shape == (batch, OUT), out_bf16.shape
    assert jnp.allclose(out_bf16, ref, atol=5e-2, rtol=5e-2), \
        float(jnp.max(jnp.abs(out_bf16 - ref)))

    print("KERNEL_OK")
</pallas_src>

<mosaic_0001>
module attributes {stable_mosaic.version = 11 : i64} {
  func.func @mlp_kernel(%arg0: i32, %arg1: memref<8x32xf32, #tpu.memory_space<vmem>>, %arg2: memref<32x128xf32, #tpu.memory_space<vmem>>, %arg3: memref<3x128x128xf32, #tpu.memory_space<vmem>>, %arg4: memref<4x128xf32, #tpu.memory_space<vmem>>, %arg5: memref<8x2xf32, #tpu.memory_space<vmem>>) attributes {dimension_semantics = [#tpu.dimension_semantics<parallel>], iteration_bounds = array<i64: 1>, scalar_prefetch = 0 : i64, scratch_operands = 0 : i64, tpu.core_type = #tpu.core_type<tc>, window_params = [{transform_indices = @transform_0, window_bounds = array<i64: 8, 32>}, {pipeline_mode = #tpu.pipeline_mode<synchronous>, transform_indices = @transform_1, window_bounds = array<i64: 32, 128>}, {pipeline_mode = #tpu.pipeline_mode<synchronous>, transform_indices = @transform_2, window_bounds = array<i64: 3, 128, 128>}, {pipeline_mode = #tpu.pipeline_mode<synchronous>, transform_indices = @transform_3, window_bounds = array<i64: 4, 128>}, {transform_indices = @transform_4, window_bounds = array<i64: 8, 2>}]} {
    %c0 = arith.constant 0 : index
    %c0_0 = arith.constant 0 : index
    %0 = vector.load %arg1[%c0, %c0_0] : memref<8x32xf32, #tpu.memory_space<vmem>>, vector<8x32xf32>
    %c0_1 = arith.constant 0 : index
    %c0_2 = arith.constant 0 : index
    %1 = vector.load %arg2[%c0_1, %c0_2] : memref<32x128xf32, #tpu.memory_space<vmem>>, vector<32x128xf32>
    %cst = arith.constant dense<0.000000e+00> : vector<8x128xf32>
    %2 = tpu.matmul %0, %1, %cst {dimension_numbers = #tpu.dot_dimension_numbers<[1], [0], [0], [1], [0, 0, 1, 1], [], []>} : vector<8x32xf32>, vector<32x128xf32>, vector<8x128xf32> -> vector<8x128xf32>
    %c0_3 = arith.constant 0 : index
    %c0_4 = arith.constant 0 : index
    %3 = vector.load %arg4[%c0_3, %c0_4] : memref<4x128xf32, #tpu.memory_space<vmem>>, vector<1x128xf32>
    %4 = vector.broadcast %3 : vector<1x128xf32> to vector<8x128xf32>
    %5 = arith.addf %2, %4 : vector<8x128xf32>
    %cst_5 = arith.constant 0.000000e+00 : f32
    %6 = vector.broadcast %cst_5 : f32 to vector<8x128xf32>
    %7 = arith.cmpf oge, %5, %6 : vector<8x128xf32>
    %cst_6 = arith.constant 0.00999999977 : f32
    %8 = vector.broadcast %cst_6 : f32 to vector<8x128xf32>
    %9 = arith.mulf %8, %5 : vector<8x128xf32>
    %10 = arith.select %7, %5, %9 : vector<8x128xi1>, vector<8x128xf32>
    %c0_7 = arith.constant 0 : index
    %c0_8 = arith.constant 0 : index
    %c0_9 = arith.constant 0 : index
    %11 = vector.load %arg3[%c0_7, %c0_8, %c0_9] : memref<3x128x128xf32, #tpu.memory_space<vmem>>, vector<1x128x128xf32>
    %12 = vector.shape_cast %11 : vector<1x128x128xf32> to vector<128x128xf32>
    %cst_10 = arith.constant dense<0.000000e+00> : vector<8x128xf32>
    %13 = tpu.matmul %10, %12, %cst_10 {dimension_numbers = #tpu.dot_dimension_numbers<[1], [0], [0], [1], [0, 0, 1, 1], [], []>} : vector<8x128xf32>, vector<128x128xf32>, vector<8x128xf32> -> vector<8x128xf32>
    %c1 = arith.constant 1 : index
    %c0_11 = arith.constant 0 : index
    %14 = vector.load %arg4[%c1, %c0_11] : memref<4x128xf32, #tpu.memory_space<vmem>>, vector<1x128xf32>
    %15 = vector.broadcast %14 : vector<1x128xf32> to vector<8x128xf32>
    %16 = arith.addf %13, %15 : vector<8x128xf32>
    %cst_12 = arith.constant 0.000000e+00 : f32
    %17 = vector.broadcast %cst_12 : f32 to vector<8x128xf32>
    %18 = arith.cmpf oge, %16, %17 : vector<8x128xf32>
    %cst_13 = arith.constant 0.00999999977 : f32
    %19 = vector.broadcast %cst_13 : f32 to vector<8x128xf32>
    %20 = arith.mulf %19, %16 : vector<8x128xf32>
    %21 = arith.select %18, %16, %20 : vector<8x128xi1>, vector<8x128xf32>
    %c1_14 = arith.constant 1 : index
    %c0_15 = arith.constant 0 : index
    %c0_16 = arith.constant 0 : index
    %22 = vector.load %arg3[%c1_14, %c0_15, %c0_16] : memref<3x128x128xf32, #tpu.memory_space<vmem>>, vector<1x128x128xf32>
    %23 = vector.shape_cast %22 : vector<1x128x128xf32> to vector<128x128xf32>
    %cst_17 = arith.constant dense<0.000000e+00> : vector<8x128xf32>
    %24 = tpu.matmul %21, %23, %cst_17 {dimension_numbers = #tpu.dot_dimension_numbers<[1], [0], [0], [1], [0, 0, 1, 1], [], []>} : vector<8x128xf32>, vector<128x128xf32>, vector<8x128xf32> -> vector<8x128xf32>
    %c2 = arith.constant 2 : index
    %c0_18 = arith.constant 0 : index
    %25 = vector.load %arg4[%c2, %c0_18] : memref<4x128xf32, #tpu.memory_space<vmem>>, vector<1x128xf32>
    %26 = vector.broadcast %25 : vector<1x128xf32> to vector<8x128xf32>
    %27 = arith.addf %24, %26 : vector<8x128xf32>
    %cst_19 = arith.constant 0.000000e+00 : f32
    %28 = vector.broadcast %cst_19 : f32 to vector<8x128xf32>
    %29 = arith.cmpf oge, %27, %28 : vector<8x128xf32>
    %cst_20 = arith.constant 0.00999999977 : f32
    %30 = vector.broadcast %cst_20 : f32 to vector<8x128xf32>
    %31 = arith.mulf %30, %27 : vector<8x128xf32>
    %32 = arith.select %29, %27, %31 : vector<8x128xi1>, vector<8x128xf32>
    %c2_21 = arith.constant 2 : index
    %c0_22 = arith.constant 0 : index
    %c0_23 = arith.constant 0 : index
    %33 = vector.load %arg3[%c2_21, %c0_22, %c0_23] : memref<3x128x128xf32, #tpu.memory_space<vmem>>, vector<1x128x128xf32>
    %34 = vector.shape_cast %33 : vector<1x128x128xf32> to vector<128x128xf32>
    %cst_24 = arith.constant dense<0.000000e+00> : vector<8x128xf32>
    %35 = tpu.matmul %32, %34, %cst_24 {dimension_numbers = #tpu.dot_dimension_numbers<[1], [0], [0], [1], [0, 0, 1, 1], [], []>} : vector<8x128xf32>, vector<128x128xf32>, vector<8x128xf32> -> vector<8x128xf32>
    %c3 = arith.constant 3 : index
    %c0_25 = arith.constant 0 : index
    %36 = vector.load %arg4[%c3, %c0_25] : memref<4x128xf32, #tpu.memory_space<vmem>>, vector<1x128xf32>
    %37 = vector.broadcast %36 : vector<1x128xf32> to vector<8x128xf32>
    %38 = arith.addf %35, %37 : vector<8x128xf32>
    %39 = vector.extract_strided_slice %38 {offsets = [0, 0], sizes = [8, 2], strides = [1, 1]} : vector<8x128xf32> to vector<8x2xf32>
    %c0_26 = arith.constant 0 : index
    %c0_27 = arith.constant 0 : index
    %40 = vector.load %arg5[%c0_26, %c0_27] : memref<8x2xf32, #tpu.memory_space<vmem>>, vector<8x2xf32>
    tpu.vector_store %arg5[%c0_26, %c0_27], %39 {strides = array<i32>} : memref<8x2xf32, #tpu.memory_space<vmem>>, vector<8x2xf32>,
    return
  }
  func.func @transform_0(%arg0: i32) -> (i32, i32) {
    %c0_i32 = arith.constant 0 : i32
    %c0_i32_0 = arith.constant 0 : i32
    return %arg0, %c0_i32 : i32, i32
  }
  func.func @transform_1(%arg0: i32) -> (i32, i32) {
    %c0_i32 = arith.constant 0 : i32
    %c0_i32_0 = arith.constant 0 : i32
    %c0_i32_1 = arith.constant 0 : i32
    return %c0_i32, %c0_i32_0 : i32, i32
  }
  func.func @transform_2(%arg0: i32) -> (i32, i32, i32) {
    %c0_i32 = arith.constant 0 : i32
    %c0_i32_0 = arith.constant 0 : i32
    %c0_i32_1 = arith.constant 0 : i32
    %c0_i32_2 = arith.constant 0 : i32
    return %c0_i32, %c0_i32_0, %c0_i32_1 : i32, i32, i32
  }
  func.func @transform_3(%arg0: i32) -> (i32, i32) {
    %c0_i32 = arith.constant 0 : i32
    %c0_i32_0 = arith.constant 0 : i32
    %c0_i32_1 = arith.constant 0 : i32
    return %c0_i32, %c0_i32_0 : i32, i32
  }
  func.func @transform_4(%arg0: i32) -> (i32, i32) {
    %c0_i32 = arith.constant 0 : i32
    %c0_i32_0 = arith.constant 0 : i32
    return %arg0, %c0_i32 : i32, i32
  }
}

</mosaic_0001>

<llo_original>
// kernel: tpu_custom_call.1
$region0: #{tpu_custom_call.1}
  #allocation0 [shape = 'u32[]', space=smem, size = 0x4, offset = 0x4, fixed_abs, tag = 'smem constant byte address 0x4 - core index']
  #allocation1 [shape = 'u32[144,128]{1,0:T(1,128)}', space=vmem, size = 0x12000, scoped, tag = 'internal scratch']
  %s0 = inlined_call_operand.hbm [shape: f32[8,32], index: 0, kind: input, shape index: {}]
  %s1 = inlined_call_operand.hbm [shape: f32[32,128], index: 1, kind: input, shape index: {}]
  %s2 = inlined_call_operand.hbm [shape: f32[3,128,128], index: 2, kind: input, shape index: {}]
  %s3 = inlined_call_operand.vmem [shape: f32[4,128], index: 3, kind: input, shape index: {}]
  %s4 = inlined_call_operand.vmem [shape: f32[8,2], index: 4, kind: output, shape index: {}]
  %s5 = sld [smem:[#allocation0]]
  $region38: #{tpu_custom_call.1} parent=0
    _
  %s7 = ssub.s32 1, %s5
  %s8 = scalar_select 0, %s7, %s5
  $region1: #{tpu_custom_call.1} parent=0
    #allocation2 [shape = 'u8[4096]{0}', space=vmem, size = 0x1000, scoped, tag = 'input window, operand 0, single buffered']
    #allocation3 [shape = 's32[1]{0}', space=sflag, size = 0x4, scoped, tag = 'scoped memory for tpu_custom_call.1']
    #allocation4 [shape = 'u8[16384]{0}', space=vmem, size = 0x4000, scoped, tag = 'input window, operand 1, single buffered']
    #allocation5 [shape = 's32[1]{0}', space=sflag, size = 0x4, scoped, tag = 'scoped memory for tpu_custom_call.1']
    #allocation6 [shape = 'u8[196608]{0}', space=vmem, size = 0x30000, scoped, tag = 'input window, operand 2, single buffered']
    %9 = vsyncpa [#allocation3], 0
    %10 = vsyncpa [#allocation5], 0
    // Predicated region
    $region2: #{tpu_custom_call.1} parent=1 // pred_check
      _
    $region3: #{tpu_custom_call.1} parent=1 // pred_check_branch
      %12 = sbr.rel (0) target = $region5
    $region4: #{tpu_custom_call.1} parent=1 // pred_region
      %s14 = ssub.s32 128, 128
      %15 = vsyncadd [#allocation3], %s14
      %s17 = sshll.u32 [#allocation2], 4
      %s18 = int_to_ptr.vmem [resolvable:$true] %s17
      %20 = dma.hbm_to_vmem [thread:$0]  %s0, 128, %s18, [#allocation3]
    $region5: #{tpu_custom_call.1} parent=1 // pred_fallthru
      _
    // Predicated region
    $region6: #{tpu_custom_call.1} parent=1 // pred_check
      _
    $region7: #{tpu_custom_call.1} parent=1 // pred_check_branch
      %22 = sbr.rel (0) target = $region9
    $region8: #{tpu_custom_call.1} parent=1 // pred_region
      %s24 = ssub.s32 512, 512
      %25 = vsyncadd [#allocation5], %s24
      %s26 = sshll.u32 [#allocation4], 4
      %s27 = int_to_ptr.vmem [resolvable:$true] %s26
      %32 = dma.hbm_to_vmem [thread:$0]  %s1, 512, %s27, [#allocation5], 128, 128, 8
    $region9: #{tpu_custom_call.1} parent=1 // pred_fallthru
      _
    // Predicated region
    $region10: #{tpu_custom_call.1} parent=1 // pred_check
      _
    $region11: #{tpu_custom_call.1} parent=1 // pred_check_branch
      %34 = sbr.rel (0) target = $region13
    $region12: #{tpu_custom_call.1} parent=1 // pred_region
      %s36 = ssub.s32 6144, 6144
      %37 = vsyncadd [#allocation5], %s36
      %s38 = sshll.u32 [#allocation6], 4
      %s39 = int_to_ptr.vmem [resolvable:$true] %s38
      %44 = dma.hbm_to_vmem [thread:$0]  %s2, 6144, %s39, [#allocation5], 128, 128, 8
    $region13: #{tpu_custom_call.1} parent=1 // pred_fallthru
      _
    // Predicated region
    $region14: #{tpu_custom_call.1} parent=1 // pred_check
      _
    $region15: #{tpu_custom_call.1} parent=1 // pred_check_branch
      %46 = sbr.rel (0) target = $region17
    $region16: #{tpu_custom_call.1} parent=1 // pred_region
      _
    $region17: #{tpu_custom_call.1} parent=1 // pred_fallthru
      _
    // Predicated region
    $region18: #{tpu_custom_call.1} parent=1 // pred_check
      _
    $region19: #{tpu_custom_call.1} parent=1 // pred_check_branch
      %48 = sbr.rel (0) target = $region21
    $region20: #{tpu_custom_call.1} parent=1 // pred_region
      %49 = dma.done [#allocation3], 128
    $region21: #{tpu_custom_call.1} parent=1 // pred_fallthru
      _
    // Predicated region
    $region22: #{tpu_custom_call.1} parent=1 // pred_check
      _
    $region23: #{tpu_custom_call.1} parent=1 // pred_check_branch
      %51 = sbr.rel (0) target = $region25
    $region24: #{tpu_custom_call.1} parent=1 // pred_region
      %52 = dma.done [#allocation5], 512
    $region25: #{tpu_custom_call.1} parent=1 // pred_fallthru
      _
    // Predicated region
    $region26: #{tpu_custom_call.1} parent=1 // pred_check
      _
    $region27: #{tpu_custom_call.1} parent=1 // pred_check_branch
      %54 = sbr.rel (0) target = $region29
    $region28: #{tpu_custom_call.1} parent=1 // pred_region
      %55 = dma.done [#allocation5], 6144
    $region29: #{tpu_custom_call.1} parent=1 // pred_fallthru
      _
    %v56 = vld [vmem:[#allocation2] sm:$0xff]
    %v57 = vld [vmem:[#allocation4] sm:$0xff]
    %v58 = vld [vmem:[#allocation4 + $0x8] sm:$0xff]
    %v59 = vld [vmem:[#allocation4 + $0x10] sm:$0xff]
    %v60 = vld [vmem:[#allocation4 + $0x18] sm:$0xff]
    %v61 = vld [vmem:[%s3] sm:$0x1]
    %v62 = vlaneseq
    %v63 = vshrl.u32 %v62, 7
    %v64 = vsub.s32 0, %v63
    %v65 = vrot.slane %v61, %v64
    %vm66 = vcmask 261120
    %v68 = vsel %vm66, %v56, 0
    %70 = vmatprep.subr.mxu0 0.0
    %71 = vmatpush1.msra.mxu0 %v57
    %72 = vmatprep.subr.mxu0 0.0
    %73 = vmatpush1.msra.mxu0 %v58
    %74 = vmatprep.subr.mxu0 0.0
    %75 = vmatpush1.msra.mxu0 %v59
    %76 = vmatprep.subr.mxu0 0.0
    %77 = vmatpush1.msra.mxu0 %v60
    %78 = vmatprep.subr.mxu0 0.0
    %79 = vmatpush1.msra.mxu0 0.0
    %80 = vmatprep.subr.mxu0 0.0
    %81 = vmatpush1.msra.mxu0 0.0
    %82 = vmatprep.subr.mxu0 0.0
    %83 = vmatpush1.msra.mxu0 0.0
    %84 = vmatprep.subr.mxu0 0.0
    %85 = vmatpush1.msra.mxu0 0.0
    %86 = vmatprep.subr.mxu0 0.0
    %87 = vmatpush1.msra.mxu0 0.0
    %88 = vmatprep.subr.mxu0 0.0
    %89 = vmatpush1.msra.mxu0 0.0
    %90 = vmatprep.subr.mxu0 0.0
    %91 = vmatpush1.msra.mxu0 0.0
    %92 = vmatprep.subr.mxu0 0.0
    %93 = vmatpush1.msra.mxu0 0.0
    %94 = vmatprep.subr.mxu0 0.0
    %95 = vmatpush1.msra.mxu0 0.0
    %96 = vmatprep.subr.mxu0 0.0
    %97 = vmatpush1.msra.mxu0 0.0
    %98 = vmatprep.subr.mxu0 0.0
    %99 = vmatpush1.msra.mxu0 0.0
    %100 = vmatprep.subr.mxu0 0.0
    %101 = vmatpush1.msra.mxu0 0.0
    %102 = vmatprep.subr.mxu0 0.0
    %103 = vmatpush1.msra.mxu0 0.0
    %104 = vmatprep.subr.mxu0 0.0
    %105 = vmatpush1.msra.mxu0 0.0
    %106 = vmatprep.subr.mxu0 0.0
    %107 = vmatpush1.msra.mxu0 0.0
    %108 = vmatprep.subr.mxu0 0.0
    %109 = vmatpush1.msra.mxu0 0.0
    %110 = vmatprep.subr.mxu0 0.0
    %111 = vmatpush1.msra.mxu0 0.0
    %112 = vmatprep.subr.mxu0 0.0
    %113 = vmatpush1.msra.mxu0 0.0
    %114 = vmatprep.subr.mxu0 0.0
    %115 = vmatpush1.msra.mxu0 0.0
    %116 = vmatprep.subr.mxu0 0.0
    %117 = vmatpush1.msra.mxu0 0.0
    %118 = vmatprep.subr.mxu0 0.0
    %119 = vmatpush1.msra.mxu0 0.0
    %120 = vmatprep.subr.mxu0 0.0
    %121 = vmatpush1.msra.mxu0 0.0
    %122 = vmatprep.subr.mxu0 0.0
    %123 = vmatpush1.msra.mxu0 0.0
    %124 = vmatprep.subr.mxu0 0.0
    %125 = vmatpush1.msra.mxu0 0.0
    %126 = vmatprep.subr.mxu0 0.0
    %127 = vmatpush1.msra.mxu0 0.0
    %128 = vmatprep.subr.mxu0 0.0
    %129 = vmatpush1.msra.mxu0 0.0
    %130 = vmatprep.subr.mxu0 0.0
    %131 = vmatpush1.msra.mxu0 0.0
    %132 = vmatprep.subr.mxu0 0.0
    %133 = vmatpush1.msra.mxu0 0.0
    %134 = vmatprep.mubr.f32.mxu0 0.0
    %135 = vmatmul.mubr.f32.gmra.mrb[0].mxu0 %v68
    %v136 = vpop.f32.mrb[0].mxu0
    %v137 = vadd.f32 %v65, %v136
    %v138 = vpop.f32.mrb[0].mxu0
    %139 = vdwg.mxu0
    %vm140 = vcmp.ge.f32.partialorder %v137, 0.0
    %v141 = vmul.f32 %v137, 0.01
    %v142 = vsel %vm140, %v137, %v141
    %v143 = vld [vmem:[#allocation6] sm:$0xff]
    %v144 = vld [vmem:[#allocation6 + $0x8] sm:$0xff]
    %v145 = vld [vmem:[#allocation6 + $0x10] sm:$0xff]
    %v146 = vld [vmem:[#allocation6 + $0x18] sm:$0xff]
    %v147 = vld [vmem:[#allocation6 + $0x20] sm:$0xff]
    %v148 = vld [vmem:[#allocation6 + $0x28] sm:$0xff]
    %v149 = vld [vmem:[#allocation6 + $0x30] sm:$0xff]
    %v150 = vld [vmem:[#allocation6 + $0x38] sm:$0xff]
    %v151 = vld [vmem:[#allocation6 + $0x40] sm:$0xff]
    %v152 = vld [vmem:[#allocation6 + $0x48] sm:$0xff]
    %v153 = vld [vmem:[#allocation6 + $0x50] sm:$0xff]
    %v154 = vld [vmem:[#allocation6 + $0x58] sm:$0xff]
    %v155 = vld [vmem:[#allocation6 + $0x60] sm:$0xff]
    %v156 = vld [vmem:[#allocation6 + $0x68] sm:$0xff]
    %v157 = vld [vmem:[#allocation6 + $0x70] sm:$0xff]
    %v158 = vld [vmem:[#allocation6 + $0x78] sm:$0xff]
    %v159 = vld [vmem:[%s3 + $0x1] sm:$0x1]
    %v160 = vlaneseq
    %v161 = vshrl.u32 %v160, 7
    %v162 = vsub.s32 0, %v161
    %v163 = vrot.slane %v159, %v162
    %164 = vmatprep.subr.mxu0 0.0
    %165 = vmatpush1.msra.mxu0 %v143
    %166 = vmatprep.subr.mxu0 0.0
    %167 = vmatpush1.msra.mxu0 %v144
    %168 = vmatprep.subr.mxu0 0.0
    %169 = vmatpush1.msra.mxu0 %v145
    %170 = vmatprep.subr.mxu0 0.0
    %171 = vmatpush1.msra.mxu0 %v146
    %172 = vmatprep.subr.mxu0 0.0
    %173 = vmatpush1.msra.mxu0 %v147
    %174 = vmatprep.subr.mxu0 0.0
    %175 = vmatpush1.msra.mxu0 %v148
    %176 = vmatprep.subr.mxu0 0.0
    %177 = vmatpush1.msra.mxu0 %v149
    %178 = vmatprep.subr.mxu0 0.0
    %179 = vmatpush1.msra.mxu0 %v150
    %180 = vmatprep.subr.mxu0 0.0
    %181 = vmatpush1.msra.mxu0 %v151
    %182 = vmatprep.subr.mxu0 0.0
    %183 = vmatpush1.msra.mxu0 %v152
    %184 = vmatprep.subr.mxu0 0.0
    %185 = vmatpush1.msra.mxu0 %v153
    %186 = vmatprep.subr.mxu0 0.0
    %187 = vmatpush1.msra.mxu0 %v154
    %188 = vmatprep.subr.mxu0 0.0
    %189 = vmatpush1.msra.mxu0 %v155
    %190 = vmatprep.subr.mxu0 0.0
    %191 = vmatpush1.msra.mxu0 %v156
    %192 = vmatprep.subr.mxu0 0.0
    %193 = vmatpush1.msra.mxu0 %v157
    %194 = vmatprep.subr.mxu0 0.0
    %195 = vmatpush1.msra.mxu0 %v158
    %196 = vmatprep.subr.mxu0 0.0
    %197 = vmatpush1.msra.mxu0 0.0
    %198 = vmatprep.subr.mxu0 0.0
    %199 = vmatpush1.msra.mxu0 0.0
    %200 = vmatprep.subr.mxu0 0.0
    %201 = vmatpush1.msra.mxu0 0.0
    %202 = vmatprep.subr.mxu0 0.0
    %203 = vmatpush1.msra.mxu0 0.0
    %204 = vmatprep.subr.mxu0 0.0
    %205 = vmatpush1.msra.mxu0 0.0
    %206 = vmatprep.subr.mxu0 0.0
    %207 = vmatpush1.msra.mxu0 0.0
    %208 = vmatprep.subr.mxu0 0.0
    %209 = vmatpush1.msra.mxu0 0.0
    %210 = vmatprep.subr.mxu0 0.0
    %211 = vmatpush1.msra.mxu0 0.0
    %212 = vmatprep.subr.mxu0 0.0
    %213 = vmatpush1.msra.mxu0 0.0
    %214 = vmatprep.subr.mxu0 0.0
    %215 = vmatpush1.msra.mxu0 0.0
    %216 = vmatprep.subr.mxu0 0.0
    %217 = vmatpush1.msra.mxu0 0.0
    %218 = vmatprep.subr.mxu0 0.0
    %219 = vmatpush1.msra.mxu0 0.0
    %220 = vmatprep.subr.mxu0 0.0
    %221 = vmatpush1.msra.mxu0 0.0
    %222 = vmatprep.subr.mxu0 0.0
    %223 = vmatpush1.msra.mxu0 0.0
    %224 = vmatprep.subr.mxu0 0.0
    %225 = vmatpush1.msra.mxu0 0.0
    %226 = vmatprep.subr.mxu0 0.0
    %227 = vmatpush1.msra.mxu0 0.0
    %228 = vmatprep.mubr.f32.mxu0 0.0
    %229 = vmatmul.mubr.f32.gmra.mrb[0].mxu0 %v142
    %v230 = vpop.f32.mrb[0].mxu0
    %v231 = vadd.f32 %v163, %v230
    %v232 = vpop.f32.mrb[0].mxu0
    %233 = vdwg.mxu0
    %vm234 = vcmp.ge.f32.partialorder %v231, 0.0
    %v235 = vmul.f32 %v231, 0.01
    %v236 = vsel %vm234, %v231, %v235
    %s237 = scalar_lea.vmem [#allocation6], 128
    %v238 = vld [vmem:[%s237] sm:$0xff]
    %v239 = vld [vmem:[%s237 + $0x8] sm:$0xff]
    %v240 = vld [vmem:[%s237 + $0x10] sm:$0xff]
    %v241 = vld [vmem:[%s237 + $0x18] sm:$0xff]
    %v242 = vld [vmem:[%s237 + $0x20] sm:$0xff]
    %v243 = vld [vmem:[%s237 + $0x28] sm:$0xff]
    %v244 = vld [vmem:[%s237 + $0x30] sm:$0xff]
    %v245 = vld [vmem:[%s237 + $0x38] sm:$0xff]
    %v246 = vld [vmem:[%s237 + $0x40] sm:$0xff]
    %v247 = vld [vmem:[%s237 + $0x48] sm:$0xff]
    %v248 = vld [vmem:[%s237 + $0x50] sm:$0xff]
    %v249 = vld [vmem:[%s237 + $0x58] sm:$0xff]
    %v250 = vld [vmem:[%s237 + $0x60] sm:$0xff]
    %v251 = vld [vmem:[%s237 + $0x68] sm:$0xff]
    %v252 = vld [vmem:[%s237 + $0x70] sm:$0xff]
    %v253 = vld [vmem:[%s237 + $0x78] sm:$0xff]
    %v254 = vld [vmem:[%s3 + $0x2] sm:$0x1]
    %v255 = vlaneseq
    %v256 = vshrl.u32 %v255, 7
    %v257 = vsub.s32 0, %v256
    %v258 = vrot.slane %v254, %v257
    %259 = vmatprep.subr.mxu0 0.0
    %260 = vmatpush1.msra.mxu0 %v238
    %261 = vmatprep.subr.mxu0 0.0
    %262 = vmatpush1.msra.mxu0 %v239
    %263 = vmatprep.subr.mxu0 0.0
    %264 = vmatpush1.msra.mxu0 %v240
    %265 = vmatprep.subr.mxu0 0.0
    %266 = vmatpush1.msra.mxu0 %v241
    %267 = vmatprep.subr.mxu0 0.0
    %268 = vmatpush1.msra.mxu0 %v242
    %269 = vmatprep.subr.mxu0 0.0
    %270 = vmatpush1.msra.mxu0 %v243
    %271 = vmatprep.subr.mxu0 0.0
    %272 = vmatpush1.msra.mxu0 %v244
    %273 = vmatprep.subr.mxu0 0.0
    %274 = vmatpush1.msra.mxu0 %v245
    %275 = vmatprep.subr.mxu0 0.0
    %276 = vmatpush1.msra.mxu0 %v246
    %277 = vmatprep.subr.mxu0 0.0
    %278 = vmatpush1.msra.mxu0 %v247
    %279 = vmatprep.subr.mxu0 0.0
    %280 = vmatpush1.msra.mxu0 %v248
    %281 = vmatprep.subr.mxu0 0.0
    %282 = vmatpush1.msra.mxu0 %v249
    %283 = vmatprep.subr.mxu0 0.0
    %284 = vmatpush1.msra.mxu0 %v250
    %285 = vmatprep.subr.mxu0 0.0
    %286 = vmatpush1.msra.mxu0 %v251
    %287 = vmatprep.subr.mxu0 0.0
    %288 = vmatpush1.msra.mxu0 %v252
    %289 = vmatprep.subr.mxu0 0.0
    %290 = vmatpush1.msra.mxu0 %v253
    %291 = vmatprep.subr.mxu0 0.0
    %292 = vmatpush1.msra.mxu0 0.0
    %293 = vmatprep.subr.mxu0 0.0
    %294 = vmatpush1.msra.mxu0 0.0
    %295 = vmatprep.subr.mxu0 0.0
    %296 = vmatpush1.msra.mxu0 0.0
    %297 = vmatprep.subr.mxu0 0.0
    %298 = vmatpush1.msra.mxu0 0.0
    %299 = vmatprep.subr.mxu0 0.0
    %300 = vmatpush1.msra.mxu0 0.0
    %301 = vmatprep.subr.mxu0 0.0
    %302 = vmatpush1.msra.mxu0 0.0
    %303 = vmatprep.subr.mxu0 0.0
    %304 = vmatpush1.msra.mxu0 0.0
    %305 = vmatprep.subr.mxu0 0.0
    %306 = vmatpush1.msra.mxu0 0.0
    %307 = vmatprep.subr.mxu0 0.0
    %308 = vmatpush1.msra.mxu0 0.0
    %309 = vmatprep.subr.mxu0 0.0
    %310 = vmatpush1.msra.mxu0 0.0
    %311 = vmatprep.subr.mxu0 0.0
    %312 = vmatpush1.msra.mxu0 0.0
    %313 = vmatprep.subr.mxu0 0.0
    %314 = vmatpush1.msra.mxu0 0.0
    %315 = vmatprep.subr.mxu0 0.0
    %316 = vmatpush1.msra.mxu0 0.0
    %317 = vmatprep.subr.mxu0 0.0
    %318 = vmatpush1.msra.mxu0 0.0
    %319 = vmatprep.subr.mxu0 0.0
    %320 = vmatpush1.msra.mxu0 0.0
    %321 = vmatprep.subr.mxu0 0.0
    %322 = vmatpush1.msra.mxu0 0.0
    %323 = vmatprep.mubr.f32.mxu0 0.0
    %324 = vmatmul.mubr.f32.gmra.mrb[0].mxu0 %v236
    %v325 = vpop.f32.mrb[0].mxu0
    %v326 = vadd.f32 %v258, %v325
    %v327 = vpop.f32.mrb[0].mxu0
    %328 = vdwg.mxu0
    %vm329 = vcmp.ge.f32.partialorder %v326, 0.0
    %v330 = vmul.f32 %v326, 0.01
    %v331 = vsel %vm329, %v326, %v330
    %s332 = scalar_lea.vmem [#allocation6], 256
    %v333 = vld [vmem:[%s332] sm:$0xff]
    %v334 = vld [vmem:[%s332 + $0x8] sm:$0xff]
    %v335 = vld [vmem:[%s332 + $0x10] sm:$0xff]
    %v336 = vld [vmem:[%s332 + $0x18] sm:$0xff]
    %v337 = vld [vmem:[%s332 + $0x20] sm:$0xff]
    %v338 = vld [vmem:[%s332 + $0x28] sm:$0xff]
    %v339 = vld [vmem:[%s332 + $0x30] sm:$0xff]
    %v340 = vld [vmem:[%s332 + $0x38] sm:$0xff]
    %v341 = vld [vmem:[%s332 + $0x40] sm:$0xff]
    %v342 = vld [vmem:[%s332 + $0x48] sm:$0xff]
    %v343 = vld [vmem:[%s332 + $0x50] sm:$0xff]
    %v344 = vld [vmem:[%s332 + $0x58] sm:$0xff]
    %v345 = vld [vmem:[%s332 + $0x60] sm:$0xff]
    %v346 = vld [vmem:[%s332 + $0x68] sm:$0xff]
    %v347 = vld [vmem:[%s332 + $0x70] sm:$0xff]
    %v348 = vld [vmem:[%s332 + $0x78] sm:$0xff]
    %v349 = vld [vmem:[%s3 + $0x3] sm:$0x1]
    %v350 = vlaneseq
    %v351 = vshrl.u32 %v350, 7
    %v352 = vsub.s32 0, %v351
    %v353 = vrot.slane %v349, %v352
    %354 = vmatprep.subr.mxu0 0.0
    %355 = vmatpush1.msra.mxu0 %v333
    %356 = vmatprep.subr.mxu0 0.0
    %357 = vmatpush1.msra.mxu0 %v334
    %358 = vmatprep.subr.mxu0 0.0
    %359 = vmatpush1.msra.mxu0 %v335
    %360 = vmatprep.subr.mxu0 0.0
    %361 = vmatpush1.msra.mxu0 %v336
    %362 = vmatprep.subr.mxu0 0.0
    %363 = vmatpush1.msra.mxu0 %v337
    %364 = vmatprep.subr.mxu0 0.0
    %365 = vmatpush1.msra.mxu0 %v338
    %366 = vmatprep.subr.mxu0 0.0
    %367 = vmatpush1.msra.mxu0 %v339
    %368 = vmatprep.subr.mxu0 0.0
    %369 = vmatpush1.msra.mxu0 %v340
    %370 = vmatprep.subr.mxu0 0.0
    %371 = vmatpush1.msra.mxu0 %v341
    %372 = vmatprep.subr.mxu0 0.0
    %373 = vmatpush1.msra.mxu0 %v342
    %374 = vmatprep.subr.mxu0 0.0
    %375 = vmatpush1.msra.mxu0 %v343
    %376 = vmatprep.subr.mxu0 0.0
    %377 = vmatpush1.msra.mxu0 %v344
    %378 = vmatprep.subr.mxu0 0.0
    %379 = vmatpush1.msra.mxu0 %v345
    %380 = vmatprep.subr.mxu0 0.0
    %381 = vmatpush1.msra.mxu0 %v346
    %382 = vmatprep.subr.mxu0 0.0
    %383 = vmatpush1.msra.mxu0 %v347
    %384 = vmatprep.subr.mxu0 0.0
    %385 = vmatpush1.msra.mxu0 %v348
    %386 = vmatprep.subr.mxu0 0.0
    %387 = vmatpush1.msra.mxu0 0.0
    %388 = vmatprep.subr.mxu0 0.0
    %389 = vmatpush1.msra.mxu0 0.0
    %390 = vmatprep.subr.mxu0 0.0
    %391 = vmatpush1.msra.mxu0 0.0
    %392 = vmatprep.subr.mxu0 0.0
    %393 = vmatpush1.msra.mxu0 0.0
    %394 = vmatprep.subr.mxu0 0.0
    %395 = vmatpush1.msra.mxu0 0.0
    %396 = vmatprep.subr.mxu0 0.0
    %397 = vmatpush1.msra.mxu0 0.0
    %398 = vmatprep.subr.mxu0 0.0
    %399 = vmatpush1.msra.mxu0 0.0
    %400 = vmatprep.subr.mxu0 0.0
    %401 = vmatpush1.msra.mxu0 0.0
    %402 = vmatprep.subr.mxu0 0.0
    %403 = vmatpush1.msra.mxu0 0.0
    %404 = vmatprep.subr.mxu0 0.0
    %405 = vmatpush1.msra.mxu0 0.0
    %406 = vmatprep.subr.mxu0 0.0
    %407 = vmatpush1.msra.mxu0 0.0
    %408 = vmatprep.subr.mxu0 0.0
    %409 = vmatpush1.msra.mxu0 0.0
    %410 = vmatprep.subr.mxu0 0.0
    %411 = vmatpush1.msra.mxu0 0.0
    %412 = vmatprep.subr.mxu0 0.0
    %413 = vmatpush1.msra.mxu0 0.0
    %414 = vmatprep.subr.mxu0 0.0
    %415 = vmatpush1.msra.mxu0 0.0
    %416 = vmatprep.subr.mxu0 0.0
    %417 = vmatpush1.msra.mxu0 0.0
    %418 = vmatprep.mubr.f32.mxu0 0.0
    %419 = vmatmul.mubr.f32.gmra.mrb[0].mxu0 %v331
    %v420 = vpop.f32.mrb[0].mxu0
    %v421 = vadd.f32 %v353, %v420
    %v422 = vpop.f32.mrb[0].mxu0
    %423 = vdwg.mxu0
    %vm424 = vcmask 15360
    %425 = vst.msk [vmem:[%s4] sm:$0xff] %vm424, %v421
    // Predicated region
    $region30: #{tpu_custom_call.1} parent=1 // pred_check
      _
    $region31: #{tpu_custom_call.1} parent=1 // pred_check_branch
      %427 = sbr.rel (0) target = $region33
    $region32: #{tpu_custom_call.1} parent=1 // pred_region
      _
    $region33: #{tpu_custom_call.1} parent=1 // pred_fallthru
      _
    // Predicated region
    $region34: #{tpu_custom_call.1} parent=1 // pred_check
      _
    $region35: #{tpu_custom_call.1} parent=1 // pred_check_branch
      %429 = sbr.rel (0) target = $region37
    $region36: #{tpu_custom_call.1} parent=1 // pred_region
      _
    $region37: #{tpu_custom_call.1} parent=1 // pred_fallthru
      _
    %430 = vsyncpa [#allocation3], 1
    %431 = vsyncpa [#allocation5], 1

</llo_original>
